<compile_context>
chip_gen: v7x
topology: tpu7x:2x2x1
jax: 0.10.0
libtpu: 0.0.40
codegen_flags: <defaults>
</compile_context>

<pallas_src>
import functools
import math

import jax
import jax.numpy as jnp
from jax.experimental import pallas as pl
from jax.experimental.pallas import tpu as pltpu


# ---------------------------------------------------------------------------
# Kernel 1: per-row KL(teacher || student) sums for one batch tile.
# ---------------------------------------------------------------------------
def _kl_rows_kernel(s_feat_ref, t_feat_ref, out_ref, *, inv_temp):
    # Cast to f32 inside the kernel (inputs may arrive bf16 over HBM).
    t = t_feat_ref[...].astype(jnp.float32) * inv_temp   # (TB, D)
    s = s_feat_ref[...].astype(jnp.float32) * inv_temp   # (TB, D)

    # Teacher: stable softmax pieces (kept un-normalized until the end).
    t_max = jnp.max(t, axis=-1, keepdims=True)
    t_shift = t - t_max
    t_exp = jnp.exp(t_shift)
    t_sum = jnp.sum(t_exp, axis=-1, keepdims=True)
    log_t_sum = jnp.log(t_sum)

    # Student: stable log_softmax.
    s_max = jnp.max(s, axis=-1, keepdims=True)
    s_shift = s - s_max
    log_s_sum = jnp.log(jnp.sum(jnp.exp(s_shift), axis=-1, keepdims=True))
    log_soft_prob = s_shift - log_s_sum

    # Row KL without per-element division:
    #   sum_j softmax(t)_j * (log_softmax(t)_j - log_softmax(s)_j)
    # = (1 / t_sum) * sum_j t_exp_j * ((t_shift_j - log_t_sum) - log_soft_prob_j)
    diff = (t_shift - log_t_sum) - log_soft_prob
    row_sum = jnp.sum(t_exp * diff, axis=-1, keepdims=True)   # (TB, 1)
    inv_t_sum = pl.reciprocal(t_sum, approx=False)            # per-row, exact
    out_ref[...] = row_sum * inv_t_sum                        # (TB, 1) f32


# ---------------------------------------------------------------------------
# Kernel 2: BCE-with-logits (mean), lane-dense (1, B) layout.
# ---------------------------------------------------------------------------
def _bce_kernel(x_ref, y_ref, out_ref):
    x = x_ref[...].astype(jnp.float32)    # (1, B)
    y = y_ref[...].astype(jnp.float32)    # (1, B)
    # numerically-stable: max(x,0) - x*y + log1p(exp(-|x|))
    bce = jnp.maximum(x, 0.0) - x * y + jnp.log1p(jnp.exp(-jnp.abs(x)))
    out_ref[0, 0] = jnp.sum(bce) * (1.0 / x.shape[1])


def _choose_tile_b(B, D):
    # Keep each f32 working tile around <= 2 MiB so that the two double-buffered
    # feature inputs plus elementwise temporaries fit comfortably under the v5e
    # 16 MiB default scoped VMEM and the v7x 64 MiB physical VMEM.
    budget_per_tile_bytes = 2 * 1024 * 1024
    tile = budget_per_tile_bytes // max(1, D * 4)
    tile = int(max(8, min(1024, (tile // 8) * 8)))
    return tile


def distillation_loss(student_logits, teacher_logits, labels,
                      teacher_features, student_features, target,
                      temperature=2.0, alpha=0.5, max_tile_b=None):
    """Pallas-backed DistillationLoss.forward.  Returns a scalar float32 loss."""
    del teacher_logits, target  # unused by the reference forward

    B, D = student_features.shape
    inv_temp = 1.0 / float(temperature)

    tile_b = _choose_tile_b(B, D)
    if max_tile_b is not None:
        tile_b = min(tile_b, int(max_tile_b))

    if B <= tile_b:
        tile_b = B                      # single full-B block (full-dim block is always legal)
        b_pad = B
    else:
        b_pad = int(math.ceil(B / tile_b) * tile_b)

    if b_pad != B:
        # Zero-padded rows give identical teacher/student distributions -> KL row == 0,
        # so they contribute nothing to the sum; divisor below uses the GLOBAL B.
        pad = ((0, b_pad - B), (0, 0))
        student_features = jnp.pad(student_features, pad)
        teacher_features = jnp.pad(teacher_features, pad)

    num_blocks = b_pad // tile_b

    kl_rows = pl.pallas_call(
        functools.partial(_kl_rows_kernel, inv_temp=inv_temp),
        out_shape=jax.ShapeDtypeStruct((b_pad, 1), jnp.float32),
        grid_spec=pltpu.PrefetchScalarGridSpec(
            num_scalar_prefetch=0,
            grid=(num_blocks,),
            in_specs=[
                pl.BlockSpec((tile_b, D), lambda i: (i, 0)),   # student_features
                pl.BlockSpec((tile_b, D), lambda i: (i, 0)),   # teacher_features
            ],
            out_specs=pl.BlockSpec((tile_b, 1), lambda i: (i, 0)),
        ),
        compiler_params=pltpu.CompilerParams(
            dimension_semantics=("parallel",),
            vmem_limit_bytes=32 * 1024 * 1024),
    )(student_features, teacher_features)

    # KLDivLoss(reduction='batchmean'): sum over all elements / GLOBAL batch size.
    cosine_loss = jnp.sum(kl_rows) / jnp.float32(B)

    # BCEWithLogitsLoss on squeezed student logits, lane-dense (1, B) layout.
    x = jnp.squeeze(student_logits, axis=1).reshape(1, -1)
    y = labels.reshape(1, -1)
    label_loss = pl.pallas_call(
        _bce_kernel,
        out_shape=jax.ShapeDtypeStruct((1, 1), jnp.float32),
        grid_spec=pltpu.PrefetchScalarGridSpec(
            num_scalar_prefetch=0,
            grid=(1,),
            in_specs=[
                pl.BlockSpec((1, x.shape[1]), lambda i: (0, 0)),
                pl.BlockSpec((1, y.shape[1]), lambda i: (0, 0)),
            ],
            out_specs=pl.BlockSpec((1, 1), lambda i: (0, 0)),
        ),
    )(x, y)[0, 0]

    return alpha * cosine_loss + (1.0 - alpha) * label_loss


def _reference_jax(student_logits, labels, teacher_features, student_features,
                   temperature=2.0, alpha=0.5):
    """Plain-JAX reference for sanity checking."""
    t = teacher_features.astype(jnp.float32) / temperature
    s = student_features.astype(jnp.float32) / temperature
    soft_teacher = jax.nn.softmax(t, axis=-1)
    soft_prob = jax.nn.log_softmax(s, axis=-1)
    kl = soft_teacher * (jnp.log(soft_teacher) - soft_prob)
    cosine_loss = jnp.sum(kl) / teacher_features.shape[0]
    x = jnp.squeeze(student_logits, axis=1).astype(jnp.float32)
    y = labels.astype(jnp.float32)
    bce = jnp.maximum(x, 0.0) - x * y + jnp.log1p(jnp.exp(-jnp.abs(x)))
    label_loss = jnp.mean(bce)
    return alpha * cosine_loss + (1 - alpha) * label_loss


if __name__ == "__main__":
    key = jax.random.PRNGKey(0)
    k1, k2, k3, k4, k5 = jax.random.split(key, 5)

    # ---- case 1: small, single-block path ----
    B, D = 8, 128
    student_features = jax.random.normal(k1, (B, D), dtype=jnp.float32)
    teacher_features = jax.random.normal(k2, (B, D), dtype=jnp.float32)
    student_logits = jax.random.normal(k3, (B, 1), dtype=jnp.float32)
    teacher_logits = jax.random.normal(k4, (B, 1), dtype=jnp.float32)  # unused in forward
    labels = jax.random.bernoulli(k5, 0.5, (B,)).astype(jnp.float32)
    target = labels  # unused in forward

    loss = distillation_loss(student_logits, teacher_logits, labels,
                             teacher_features, student_features, target,
                             temperature=2.0, alpha=0.5)
    loss = jax.block_until_ready(loss)
    ref = _reference_jax(student_logits, labels, teacher_features,
                         student_features, temperature=2.0, alpha=0.5)
    assert jnp.allclose(loss, ref, rtol=1e-5, atol=1e-5), (loss, ref)

    # ---- case 2: exercise the batch-tiled + padded path (still small) ----
    B2, D2 = 20, 128
    kk = jax.random.split(jax.random.PRNGKey(1), 4)
    sf2 = jax.random.normal(kk[0], (B2, D2), dtype=jnp.float32)
    tf2 = jax.random.normal(kk[1], (B2, D2), dtype=jnp.float32)
    sl2 = jax.random.normal(kk[2], (B2, 1), dtype=jnp.float32)
    lb2 = jax.random.bernoulli(kk[3], 0.5, (B2,)).astype(jnp.float32)
    loss2 = distillation_loss(sl2, sl2, lb2, tf2, sf2, lb2,
                              temperature=3.0, alpha=0.3, max_tile_b=8)
    loss2 = jax.block_until_ready(loss2)
    ref2 = _reference_jax(sl2, lb2, tf2, sf2, temperature=3.0, alpha=0.3)
    assert jnp.allclose(loss2, ref2, rtol=1e-5, atol=1e-5), (loss2, ref2)

    print("KERNEL_OK")
</pallas_src>

<mosaic_0001>
module attributes {stable_mosaic.version = 11 : i64} {
  func.func @_kl_rows_kernel(%arg0: i32, %arg1: memref<8x128xf32, #tpu.memory_space<vmem>>, %arg2: memref<8x128xf32, #tpu.memory_space<vmem>>, %arg3: memref<8x1xf32, #tpu.memory_space<vmem>>) attributes {dimension_semantics = [#tpu.dimension_semantics<parallel>], iteration_bounds = array<i64: 1>, scalar_prefetch = 0 : i64, scratch_operands = 0 : i64, tpu.core_type = #tpu.core_type<tc>, window_params = [{transform_indices = @transform_0, window_bounds = array<i64: 8, 128>}, {transform_indices = @transform_1, window_bounds = array<i64: 8, 128>}, {transform_indices = @transform_2, window_bounds = array<i64: 8, 1>}]} {
    %c0 = arith.constant 0 : index
    %c0_0 = arith.constant 0 : index
    %0 = vector.load %arg2[%c0, %c0_0] : memref<8x128xf32, #tpu.memory_space<vmem>>, vector<8x128xf32>
    %cst = arith.constant 5.000000e-01 : f32
    %1 = vector.broadcast %cst : f32 to vector<8x128xf32>
    %2 = arith.mulf %0, %1 : vector<8x128xf32>
    %c0_1 = arith.constant 0 : index
    %c0_2 = arith.constant 0 : index
    %3 = vector.load %arg1[%c0_1, %c0_2] : memref<8x128xf32, #tpu.memory_space<vmem>>, vector<8x128xf32>
    %cst_3 = arith.constant 5.000000e-01 : f32
    %4 = vector.broadcast %cst_3 : f32 to vector<8x128xf32>
    %5 = arith.mulf %3, %4 : vector<8x128xf32>
    %cst_4 = arith.constant dense<0xFF800000> : vector<8xf32>
    %6 = vector.multi_reduction <maximumf>, %2, %cst_4 [1] : vector<8x128xf32> to vector<8xf32>
    %7 = vector.shape_cast %6 : vector<8xf32> to vector<8x1xf32>
    %8 = vector.broadcast %7 : vector<8x1xf32> to vector<8x128xf32>
    %9 = arith.subf %2, %8 : vector<8x128xf32>
    %10 = math.exp %9 : vector<8x128xf32>
    %cst_5 = arith.constant dense<0.000000e+00> : vector<8xf32>
    %11 = vector.multi_reduction <add>, %10, %cst_5 [1] : vector<8x128xf32> to vector<8xf32>
    %12 = vector.shape_cast %11 : vector<8xf32> to vector<8x1xf32>
    %13 = math.log %12 : vector<8x1xf32>
    %cst_6 = arith.constant dense<0xFF800000> : vector<8xf32>
    %14 = vector.multi_reduction <maximumf>, %5, %cst_6 [1] : vector<8x128xf32> to vector<8xf32>
    %15 = vector.shape_cast %14 : vector<8xf32> to vector<8x1xf32>
    %16 = vector.broadcast %15 : vector<8x1xf32> to vector<8x128xf32>
    %17 = arith.subf %5, %16 : vector<8x128xf32>
    %18 = math.exp %17 : vector<8x128xf32>
    %cst_7 = arith.constant dense<0.000000e+00> : vector<8xf32>
    %19 = vector.multi_reduction <add>, %18, %cst_7 [1] : vector<8x128xf32> to vector<8xf32>
    %20 = vector.shape_cast %19 : vector<8xf32> to vector<8x1xf32>
    %21 = math.log %20 : vector<8x1xf32>
    %22 = vector.broadcast %21 : vector<8x1xf32> to vector<8x128xf32>
    %23 = arith.subf %17, %22 : vector<8x128xf32>
    %24 = vector.broadcast %13 : vector<8x1xf32> to vector<8x128xf32>
    %25 = arith.subf %9, %24 : vector<8x128xf32>
    %26 = arith.subf %25, %23 : vector<8x128xf32>
    %27 = arith.mulf %10, %26 : vector<8x128xf32>
    %cst_8 = arith.constant dense<0.000000e+00> : vector<8xf32>
    %28 = vector.multi_reduction <add>, %27, %cst_8 [1] : vector<8x128xf32> to vector<8xf32>
    %29 = vector.shape_cast %28 : vector<8xf32> to vector<8x1xf32>
    %30 = tpu.reciprocal %12 : vector<8x1xf32> -> vector<8x1xf32>
    %31 = arith.mulf %29, %30 : vector<8x1xf32>
    %c0_9 = arith.constant 0 : index
    %c0_10 = arith.constant 0 : index
    %32 = vector.load %arg3[%c0_9, %c0_10] : memref<8x1xf32, #tpu.memory_space<vmem>>, vector<8x1xf32>
    tpu.vector_store %arg3[%c0_9, %c0_10], %31 {strides = array<i32>} : memref<8x1xf32, #tpu.memory_space<vmem>>, vector<8x1xf32>,
    return
  }
  func.func @transform_0(%arg0: i32) -> (i32, i32) {
    %c0_i32 = arith.constant 0 : i32
    %c0_i32_0 = arith.constant 0 : i32
    return %arg0, %c0_i32 : i32, i32
  }
  func.func @transform_1(%arg0: i32) -> (i32, i32) {
    %c0_i32 = arith.constant 0 : i32
    %c0_i32_0 = arith.constant 0 : i32
    return %arg0, %c0_i32 : i32, i32
  }
  func.func @transform_2(%arg0: i32) -> (i32, i32) {
    %c0_i32 = arith.constant 0 : i32
    %c0_i32_0 = arith.constant 0 : i32
    return %arg0, %c0_i32 : i32, i32
  }
}

</mosaic_0001>

<llo_original>
// kernel: tpu_custom_call.1
$region0: #{tpu_custom_call.1}
  #allocation0 [shape = 'u32[]', space=smem, size = 0x4, offset = 0x4, fixed_abs, tag = 'smem constant byte address 0x4 - core index']
  #allocation1 [shape = 'u32[144,128]{1,0:T(1,128)}', space=vmem, size = 0x12000, scoped, tag = 'internal scratch']
  %s0 = inlined_call_operand.hbm [shape: f32[8,128], index: 0, kind: input, shape index: {}]
  %s1 = inlined_call_operand.hbm [shape: f32[8,128], index: 1, kind: input, shape index: {}]
  %s2 = inlined_call_operand.vmem [shape: f32[8,1], index: 2, kind: output, shape index: {}]
  %s3 = sld [smem:[#allocation0]]
  $region26: #{tpu_custom_call.1} parent=0
    _
  %s5 = ssub.s32 1, %s3
  %s6 = scalar_select 0, %s5, %s3
  $region1: #{tpu_custom_call.1} parent=0
    #allocation2 [shape = 'u8[4096]{0}', space=vmem, size = 0x1000, scoped, tag = 'input window, operand 0, single buffered']
    #allocation3 [shape = 's32[1]{0}', space=sflag, size = 0x4, scoped, tag = 'scoped memory for tpu_custom_call.1']
    #allocation4 [shape = 'u8[4096]{0}', space=vmem, size = 0x1000, scoped, tag = 'input window, operand 1, single buffered']
    #allocation5 [shape = 's32[1]{0}', space=sflag, size = 0x4, scoped, tag = 'scoped memory for tpu_custom_call.1']
    %7 = vsyncpa [#allocation3], 0
    %8 = vsyncpa [#allocation5], 0
    // Predicated region
    $region2: #{tpu_custom_call.1} parent=1 // pred_check
      _
    $region3: #{tpu_custom_call.1} parent=1 // pred_check_branch
      %10 = sbr.rel (0) target = $region5
    $region4: #{tpu_custom_call.1} parent=1 // pred_region
      %s12 = ssub.s32 128, 128
      %13 = vsyncadd [#allocation3], %s12
      %s15 = sshll.u32 [#allocation2], 4
      %s16 = int_to_ptr.vmem [resolvable:$true] %s15
      %18 = dma.hbm_to_vmem [thread:$0]  %s0, 128, %s16, [#allocation3]
    $region5: #{tpu_custom_call.1} parent=1 // pred_fallthru
      _
    // Predicated region
    $region6: #{tpu_custom_call.1} parent=1 // pred_check
      _
    $region7: #{tpu_custom_call.1} parent=1 // pred_check_branch
      %20 = sbr.rel (0) target = $region9
    $region8: #{tpu_custom_call.1} parent=1 // pred_region
      %s22 = ssub.s32 128, 128
      %23 = vsyncadd [#allocation5], %s22
      %s25 = sshll.u32 [#allocation4], 4
      %s26 = int_to_ptr.vmem [resolvable:$true] %s25
      %28 = dma.hbm_to_vmem [thread:$0]  %s1, 128, %s26, [#allocation5]
    $region9: #{tpu_custom_call.1} parent=1 // pred_fallthru
      _
    // Predicated region
    $region10: #{tpu_custom_call.1} parent=1 // pred_check
      _
    $region11: #{tpu_custom_call.1} parent=1 // pred_check_branch
      %30 = sbr.rel (0) target = $region13
    $region12: #{tpu_custom_call.1} parent=1 // pred_region
      %31 = dma.done [#allocation3], 128
    $region13: #{tpu_custom_call.1} parent=1 // pred_fallthru
      _
    // Predicated region
    $region14: #{tpu_custom_call.1} parent=1 // pred_check
      _
    $region15: #{tpu_custom_call.1} parent=1 // pred_check_branch
      %33 = sbr.rel (0) target = $region17
    $region16: #{tpu_custom_call.1} parent=1 // pred_region
      %34 = dma.done [#allocation5], 128
    $region17: #{tpu_custom_call.1} parent=1 // pred_fallthru
      _
    %v35 = vld [vmem:[#allocation4] sm:$0xff]
    %v36 = vmul.f32 %v35, 0.5
    %v37 = vld [vmem:[#allocation2] sm:$0xff]
    %v38 = vmul.f32 %v37, 0.5
    %39 = vmax.xlane.f32.xlu0 %v36
    %v40 = vpop.xlane.xlu0 %39
    %v41 = vsub.f32 %v36, %v40
    %v42 = vmul.f32 %v41, 1.442695
    %v43 = vpow.pop %v42
    %44 = vadd.xlane.f32.xlu0 %v43
    %v45 = vpop.xlane.xlu0 %44
    %v46 = vlog2.pop %v45
    %v47 = vmul.f32 %v46, 0.6931472
    %48 = vmax.xlane.f32.xlu0 %v38
    %v49 = vpop.xlane.xlu0 %48
    %v50 = vsub.f32 %v38, %v49
    %v51 = vmul.f32 %v50, 1.442695
    %v52 = vpow.pop %v51
    %53 = vadd.xlane.f32.xlu0 %v52
    %v54 = vpop.xlane.xlu0 %53
    %v55 = vlog2.pop %v54
    %v56 = vmul.f32 %v55, 0.6931472
    %v57 = vsub.f32 %v50, %v56
    %v58 = vsub.f32 %v41, %v47
    %v59 = vsub.f32 %v58, %v57
    %v60 = vmul.f32 %v43, %v59
    %61 = vadd.xlane.f32.xlu0 %v60
    %v62 = vpop.xlane.xlu0 %61
    %v63 = vrcp.pop %v45
    %v64 = vmul.f32 %v62, %v63
    %vm65 = vcmask 7168
    %66 = vst.msk [vmem:[%s2] sm:$0xff] %vm65, %v64
    // Predicated region
    $region18: #{tpu_custom_call.1} parent=1 // pred_check
      _
    $region19: #{tpu_custom_call.1} parent=1 // pred_check_branch
      %68 = sbr.rel (0) target = $region21
    $region20: #{tpu_custom_call.1} parent=1 // pred_region
      _
    $region21: #{tpu_custom_call.1} parent=1 // pred_fallthru
      _
    // Predicated region
    $region22: #{tpu_custom_call.1} parent=1 // pred_check
      _
    $region23: #{tpu_custom_call.1} parent=1 // pred_check_branch
      %70 = sbr.rel (0) target = $region25
    $region24: #{tpu_custom_call.1} parent=1 // pred_region
      _
    $region25: #{tpu_custom_call.1} parent=1 // pred_fallthru
      _
    %71 = vsyncpa [#allocation3], 1
    %72 = vsyncpa [#allocation5], 1

</llo_original>
